<compile_context>
chip_gen: v6e
topology: v6e:2x2x1
jax: 0.10.0
libtpu: 0.0.40
codegen_flags: <defaults>
</compile_context>

<pallas_src>
import math

import jax
import jax.numpy as jnp
from jax.experimental import pallas as pl
from jax.experimental.pallas import tpu as pltpu

# ----------------------------- model config ---------------------------------
VOCAB_SIZE = 50
DIM_MODEL = 32            # embedding dim D
NUM_FILTERS = 8           # F
WINDOW_SIZES = [3, 5]     # odd windows (the PyTorch forward assert requires it)
NUM_CLASSES = 4
DROPOUT = 0.25            # identity at inference
BATCH = 2
SEQ_LEN = 16

NW = len(WINDOW_SIZES)
W_MAX = max(WINDOW_SIZES)
CENTER = (W_MAX - 1) // 2
F_TOTAL = NUM_FILTERS * NW
VOCAB_PAD = 128           # pad vocab to one full lane width for the one-hot matmul


# ------------------------------ Pallas kernel --------------------------------
def textcnn_kernel(tok_ref, tab_ref, wconv_ref, bconv_ref, wf_ref, bf_ref,
                   out_ref, pad_ref):
    """Fused forward.  Single grid point, whole-array VMEM blocks.

    tok_ref  : (B*S, 1) int32   token ids
    tab_ref  : (VOCAB_PAD, D)   embedding table, zero-padded rows
    wconv_ref: (W_MAX, D, NW*F) fused conv taps (all windows, zero-padded)
    bconv_ref: (1, NW*F)        fused conv bias
    wf_ref   : (NW*F, C), bf_ref: (1, C)
    out_ref  : (B, C)
    pad_ref  : VMEM scratch (B, S + W_MAX - 1, D) zero-padded embeddings
    """
    B, s_pad, D = pad_ref.shape
    S = s_pad - (W_MAX - 1)
    BS = B * S

    # 1) Embedding gather as a one-hot matmul on the MXU (vocab is tiny).
    tok = tok_ref[...]                                              # (BS, 1)
    vocab_ids = jax.lax.broadcasted_iota(jnp.int32, (BS, VOCAB_PAD), 1)
    one_hot = (tok == vocab_ids).astype(jnp.float32)                # (BS, V_pad)
    emb = jnp.dot(one_hot, tab_ref[...],
                  preferred_element_type=jnp.float32)               # (BS, D)

    # 2) Write embeddings into the zero-padded scratch (symmetric seq padding
    #    of the widest window); out-of-range rows stay zero.
    pad_ref[...] = jnp.zeros_like(pad_ref)
    for b in range(B):                                              # static unroll
        pad_ref[b, CENTER:CENTER + S, :] = emb[b * S:(b + 1) * S, :]

    # 3) All-window conv as an accumulation of W_MAX shifted 2-D matmuls:
    #    conv[bs, :] = sum_k padded_emb[bs + k - CENTER] @ W_fused[k]
    acc = jnp.zeros((BS, F_TOTAL), jnp.float32)
    for k in range(W_MAX):                                          # static unroll
        x_k = pad_ref[:, k:k + S, :].reshape(BS, D)                 # leading-dim merge
        acc = acc + jnp.dot(x_k, wconv_ref[k],
                            preferred_element_type=jnp.float32)     # (BS, NW*F)

    # 4) Single bias + ReLU + max-pool over the sequence axis.
    conv = jnp.maximum(acc + bconv_ref[...], 0.0)                   # (BS, NW*F)
    pooled = jnp.max(conv.reshape(B, S, F_TOTAL), axis=1)           # (B, NW*F)

    # 5) Dropout = identity at inference; final linear.
    y = jnp.dot(pooled, wf_ref[...],
                preferred_element_type=jnp.float32) + bf_ref[...]   # (B, C)
    out_ref[...] = y.astype(out_ref.dtype)


# ------------------------------ wrapper ---------------------------------------
@jax.jit
def textcnn_forward(tokens, emb_pad, w_fused, b_fused, wf, bf):
    B, S = tokens.shape
    tok2d = tokens.reshape(B * S, 1).astype(jnp.int32)

    vmem = pl.BlockSpec(memory_space=pltpu.MemorySpace.VMEM)
    flops = 2 * (B * S * VOCAB_PAD * DIM_MODEL                 # one-hot gather
                 + W_MAX * B * S * DIM_MODEL * F_TOTAL         # fused conv
                 + B * F_TOTAL * NUM_CLASSES)                  # final linear
    bytes_accessed = 4 * (B * S + VOCAB_PAD * DIM_MODEL
                          + W_MAX * DIM_MODEL * F_TOTAL + F_TOTAL
                          + F_TOTAL * NUM_CLASSES + NUM_CLASSES
                          + B * NUM_CLASSES)

    return pl.pallas_call(
        textcnn_kernel,
        out_shape=jax.ShapeDtypeStruct((B, NUM_CLASSES), jnp.float32),
        in_specs=[vmem] * 6,
        out_specs=vmem,
        scratch_shapes=[pltpu.VMEM((B, S + W_MAX - 1, DIM_MODEL), jnp.float32)],
        cost_estimate=pl.CostEstimate(flops=flops, transcendentals=0,
                                      bytes_accessed=bytes_accessed),
    )(tok2d, emb_pad, w_fused, b_fused, wf, bf)


# ------------------------------ param prep ------------------------------------
def init_params(key):
    """PyTorch-layout parameters with matching init distributions."""
    keys = jax.random.split(key, 2 * NW + 3)
    # Embedding ~ U(-0.5/D, 0.5/D)  (matches _init_weights)
    emb_table = jax.random.uniform(
        keys[0], (VOCAB_SIZE, DIM_MODEL), jnp.float32,
        minval=-0.5 / DIM_MODEL, maxval=0.5 / DIM_MODEL)

    conv_weights, conv_biases = [], []
    for i, w in enumerate(WINDOW_SIZES):
        fan_in = 1 * w * DIM_MODEL
        bound = 1.0 / math.sqrt(fan_in)
        # PyTorch Conv2d weight shape: (F, 1, w, D)
        cw = jax.random.uniform(keys[1 + 2 * i], (NUM_FILTERS, 1, w, DIM_MODEL),
                                jnp.float32, minval=-bound, maxval=bound)
        cb = jax.random.uniform(keys[2 + 2 * i], (1, NUM_FILTERS),
                                jnp.float32, minval=-bound, maxval=bound)
        conv_weights.append(cw)
        conv_biases.append(cb)

    fan_in = F_TOTAL
    bound = 1.0 / math.sqrt(fan_in)
    # PyTorch Linear weight (C, NW*F) -> transposed for feat @ W
    wf = jax.random.uniform(keys[-2], (NUM_CLASSES, fan_in), jnp.float32,
                            minval=-bound, maxval=bound).T            # (NW*F, C)
    bf = jax.random.uniform(keys[-1], (1, NUM_CLASSES), jnp.float32,
                            minval=-bound, maxval=bound)
    return emb_table, conv_weights, conv_biases, wf, bf


def prepare_fused_params(emb_table, conv_weights, conv_biases, wf, bf):
    """One-time weight prep (outside the hot path): pad vocab rows and fuse all
    conv windows into a single (W_MAX, D, NW*F) weight + (1, NW*F) bias."""
    emb_pad = jnp.zeros((VOCAB_PAD, DIM_MODEL), jnp.float32)
    emb_pad = emb_pad.at[:VOCAB_SIZE].set(emb_table)

    w_fused = jnp.zeros((W_MAX, DIM_MODEL, F_TOTAL), jnp.float32)
    for i, (w, cw) in enumerate(zip(WINDOW_SIZES, conv_weights)):
        p = (w - 1) // 2
        # (F, 1, w, D) -> (w, D, F); place taps at offsets CENTER-p .. CENTER+p
        taps = jnp.transpose(cw.reshape(NUM_FILTERS, w, DIM_MODEL), (1, 2, 0))
        w_fused = w_fused.at[CENTER - p:CENTER - p + w, :,
                             i * NUM_FILTERS:(i + 1) * NUM_FILTERS].set(taps)
    b_fused = jnp.concatenate(conv_biases, axis=-1)                   # (1, NW*F)
    return emb_pad, w_fused, b_fused, wf, bf


# ------------------------------ reference -------------------------------------
def textcnn_reference(tokens, emb_table, conv_weights, conv_biases, wf, bf):
    emb = jnp.take(emb_table, tokens, axis=0)                         # (B, S, D)
    B, S, D = emb.shape
    pooled = []
    for w, cw, cb in zip(WINDOW_SIZES, conv_weights, conv_biases):
        p = (w - 1) // 2
        padded = jnp.pad(emb, ((0, 0), (p, p), (0, 0)))
        cols = jnp.concatenate([padded[:, k:k + S, :] for k in range(w)], -1)
        cw_mat = cw.reshape(NUM_FILTERS, w * D).T                     # (w*D, F)
        conv = jnp.einsum("bsk,kf->bsf", cols, cw_mat) + cb
        conv = jnp.maximum(conv, 0.0)
        pooled.append(jnp.max(conv, axis=1))
    feat = jnp.concatenate(pooled, axis=-1)
    return feat @ wf + bf


# --------------------------------- main ----------------------------------------
if __name__ == "__main__":
    key = jax.random.PRNGKey(0)
    k_tok, k_params = jax.random.split(key)

    tokens = jax.random.randint(k_tok, (BATCH, SEQ_LEN), 0, VOCAB_SIZE,
                                dtype=jnp.int32)
    emb_table, conv_weights, conv_biases, wf, bf = init_params(k_params)
    fused = prepare_fused_params(emb_table, conv_weights, conv_biases, wf, bf)

    y = textcnn_forward(tokens, *fused)
    y = jax.block_until_ready(y)

    y_ref = textcnn_reference(tokens, emb_table, conv_weights, conv_biases,
                              wf, bf)
    assert y.shape == (BATCH, NUM_CLASSES)
    assert jnp.allclose(y, y_ref, atol=1e-5, rtol=1e-5), (y, y_ref)
    print("KERNEL_OK")
</pallas_src>

<mosaic_0001>
module attributes {stable_mosaic.version = 11 : i64} {
  func.func @textcnn_kernel(%arg0: memref<32x1xi32, #tpu.memory_space<vmem>>, %arg1: memref<128x32xf32, #tpu.memory_space<vmem>>, %arg2: memref<5x32x16xf32, #tpu.memory_space<vmem>>, %arg3: memref<1x16xf32, #tpu.memory_space<vmem>>, %arg4: memref<16x4xf32, #tpu.memory_space<vmem>>, %arg5: memref<1x4xf32, #tpu.memory_space<vmem>>, %arg6: memref<2x4xf32, #tpu.memory_space<vmem>>, %arg7: memref<2x20x32xf32, #tpu.memory_space<vmem>>) attributes {dimension_semantics = [], scalar_prefetch = 0 : i64, scratch_operands = 1 : i64, tpu.core_type = #tpu.core_type<tc>} {
    %c0 = arith.constant 0 : index
    %c0_0 = arith.constant 0 : index
    %0 = vector.load %arg0[%c0, %c0_0] : memref<32x1xi32, #tpu.memory_space<vmem>>, vector<32x1xi32>
    %1 = tpu.iota {dimensions = array<i32: 1>} : vector<32x128xi32>
    %2 = vector.broadcast %0 : vector<32x1xi32> to vector<32x128xi32>
    %3 = arith.cmpi eq, %2, %1 : vector<32x128xi32>
    %4 = arith.extui %3 : vector<32x128xi1> to vector<32x128xi32>
    %5 = arith.sitofp %4 : vector<32x128xi32> to vector<32x128xf32>
    %c0_1 = arith.constant 0 : index
    %c0_2 = arith.constant 0 : index
    %6 = vector.load %arg1[%c0_1, %c0_2] : memref<128x32xf32, #tpu.memory_space<vmem>>, vector<128x32xf32>
    %cst = arith.constant dense<0.000000e+00> : vector<32x32xf32>
    %7 = tpu.matmul %5, %6, %cst {dimension_numbers = #tpu.dot_dimension_numbers<[1], [0], [0], [1], [0, 0, 1, 1], [], []>} : vector<32x128xf32>, vector<128x32xf32>, vector<32x32xf32> -> vector<32x32xf32>
    %cst_3 = arith.constant 0.000000e+00 : f32
    %8 = vector.broadcast %cst_3 : f32 to vector<2x20x32xf32>
    %c0_4 = arith.constant 0 : index
    %c0_5 = arith.constant 0 : index
    %c0_6 = arith.constant 0 : index
    %9 = vector.load %arg7[%c0_4, %c0_5, %c0_6] : memref<2x20x32xf32, #tpu.memory_space<vmem>>, vector<2x20x32xf32>
    tpu.vector_store %arg7[%c0_4, %c0_5, %c0_6], %8 {strides = array<i32>} : memref<2x20x32xf32, #tpu.memory_space<vmem>>, vector<2x20x32xf32>,
    %10 = vector.extract_strided_slice %7 {offsets = [0, 0], sizes = [16, 32], strides = [1, 1]} : vector<32x32xf32> to vector<16x32xf32>
    %c0_7 = arith.constant 0 : index
    %c2 = arith.constant 2 : index
    %c0_8 = arith.constant 0 : index
    %11 = vector.load %arg7[%c0_7, %c2, %c0_8] : memref<2x20x32xf32, #tpu.memory_space<vmem>>, vector<1x16x32xf32>
    %12 = vector.shape_cast %11 : vector<1x16x32xf32> to vector<16x32xf32>
    %13 = vector.shape_cast %10 : vector<16x32xf32> to vector<1x16x32xf32>
    tpu.vector_store %arg7[%c0_7, %c2, %c0_8], %13 {strides = array<i32>} : memref<2x20x32xf32, #tpu.memory_space<vmem>>, vector<1x16x32xf32>,
    %14 = vector.extract_strided_slice %7 {offsets = [16, 0], sizes = [16, 32], strides = [1, 1]} : vector<32x32xf32> to vector<16x32xf32>
    %c1 = arith.constant 1 : index
    %c2_9 = arith.constant 2 : index
    %c0_10 = arith.constant 0 : index
    %15 = vector.load %arg7[%c1, %c2_9, %c0_10] : memref<2x20x32xf32, #tpu.memory_space<vmem>>, vector<1x16x32xf32>
    %16 = vector.shape_cast %15 : vector<1x16x32xf32> to vector<16x32xf32>
    %17 = vector.shape_cast %14 : vector<16x32xf32> to vector<1x16x32xf32>
    tpu.vector_store %arg7[%c1, %c2_9, %c0_10], %17 {strides = array<i32>} : memref<2x20x32xf32, #tpu.memory_space<vmem>>, vector<1x16x32xf32>,
    %cst_11 = arith.constant 0.000000e+00 : f32
    %18 = vector.broadcast %cst_11 : f32 to vector<32x16xf32>
    %c0_12 = arith.constant 0 : index
    %c0_13 = arith.constant 0 : index
    %c0_14 = arith.constant 0 : index
    %19 = vector.load %arg7[%c0_12, %c0_13, %c0_14] : memref<2x20x32xf32, #tpu.memory_space<vmem>>, vector<2x16x32xf32>
    %20 = vector.shape_cast %19 : vector<2x16x32xf32> to vector<32x32xf32>
    %c0_15 = arith.constant 0 : index
    %c0_16 = arith.constant 0 : index
    %c0_17 = arith.constant 0 : index
    %21 = vector.load %arg2[%c0_15, %c0_16, %c0_17] : memref<5x32x16xf32, #tpu.memory_space<vmem>>, vector<1x32x16xf32>
    %22 = vector.shape_cast %21 : vector<1x32x16xf32> to vector<32x16xf32>
    %cst_18 = arith.constant dense<0.000000e+00> : vector<32x16xf32>
    %23 = tpu.matmul %20, %22, %cst_18 {dimension_numbers = #tpu.dot_dimension_numbers<[1], [0], [0], [1], [0, 0, 1, 1], [], []>} : vector<32x32xf32>, vector<32x16xf32>, vector<32x16xf32> -> vector<32x16xf32>
    %24 = arith.addf %18, %23 : vector<32x16xf32>
    %c0_19 = arith.constant 0 : index
    %c1_20 = arith.constant 1 : index
    %c0_21 = arith.constant 0 : index
    %25 = vector.load %arg7[%c0_19, %c1_20, %c0_21] : memref<2x20x32xf32, #tpu.memory_space<vmem>>, vector<2x16x32xf32>
    %26 = vector.shape_cast %25 : vector<2x16x32xf32> to vector<32x32xf32>
    %c1_22 = arith.constant 1 : index
    %c0_23 = arith.constant 0 : index
    %c0_24 = arith.constant 0 : index
    %27 = vector.load %arg2[%c1_22, %c0_23, %c0_24] : memref<5x32x16xf32, #tpu.memory_space<vmem>>, vector<1x32x16xf32>
    %28 = vector.shape_cast %27 : vector<1x32x16xf32> to vector<32x16xf32>
    %cst_25 = arith.constant dense<0.000000e+00> : vector<32x16xf32>
    %29 = tpu.matmul %26, %28, %cst_25 {dimension_numbers = #tpu.dot_dimension_numbers<[1], [0], [0], [1], [0, 0, 1, 1], [], []>} : vector<32x32xf32>, vector<32x16xf32>, vector<32x16xf32> -> vector<32x16xf32>
    %30 = arith.addf %24, %29 : vector<32x16xf32>
    %c0_26 = arith.constant 0 : index
    %c2_27 = arith.constant 2 : index
    %c0_28 = arith.constant 0 : index
    %31 = vector.load %arg7[%c0_26, %c2_27, %c0_28] : memref<2x20x32xf32, #tpu.memory_space<vmem>>, vector<2x16x32xf32>
    %32 = vector.shape_cast %31 : vector<2x16x32xf32> to vector<32x32xf32>
    %c2_29 = arith.constant 2 : index
    %c0_30 = arith.constant 0 : index
    %c0_31 = arith.constant 0 : index
    %33 = vector.load %arg2[%c2_29, %c0_30, %c0_31] : memref<5x32x16xf32, #tpu.memory_space<vmem>>, vector<1x32x16xf32>
    %34 = vector.shape_cast %33 : vector<1x32x16xf32> to vector<32x16xf32>
    %cst_32 = arith.constant dense<0.000000e+00> : vector<32x16xf32>
    %35 = tpu.matmul %32, %34, %cst_32 {dimension_numbers = #tpu.dot_dimension_numbers<[1], [0], [0], [1], [0, 0, 1, 1], [], []>} : vector<32x32xf32>, vector<32x16xf32>, vector<32x16xf32> -> vector<32x16xf32>
    %36 = arith.addf %30, %35 : vector<32x16xf32>
    %c0_33 = arith.constant 0 : index
    %c3 = arith.constant 3 : index
    %c0_34 = arith.constant 0 : index
    %37 = vector.load %arg7[%c0_33, %c3, %c0_34] : memref<2x20x32xf32, #tpu.memory_space<vmem>>, vector<2x16x32xf32>
    %38 = vector.shape_cast %37 : vector<2x16x32xf32> to vector<32x32xf32>
    %c3_35 = arith.constant 3 : index
    %c0_36 = arith.constant 0 : index
    %c0_37 = arith.constant 0 : index
    %39 = vector.load %arg2[%c3_35, %c0_36, %c0_37] : memref<5x32x16xf32, #tpu.memory_space<vmem>>, vector<1x32x16xf32>
    %40 = vector.shape_cast %39 : vector<1x32x16xf32> to vector<32x16xf32>
    %cst_38 = arith.constant dense<0.000000e+00> : vector<32x16xf32>
    %41 = tpu.matmul %38, %40, %cst_38 {dimension_numbers = #tpu.dot_dimension_numbers<[1], [0], [0], [1], [0, 0, 1, 1], [], []>} : vector<32x32xf32>, vector<32x16xf32>, vector<32x16xf32> -> vector<32x16xf32>
    %42 = arith.addf %36, %41 : vector<32x16xf32>
    %c0_39 = arith.constant 0 : index
    %c4 = arith.constant 4 : index
    %c0_40 = arith.constant 0 : index
    %43 = vector.load %arg7[%c0_39, %c4, %c0_40] : memref<2x20x32xf32, #tpu.memory_space<vmem>>, vector<2x16x32xf32>
    %44 = vector.shape_cast %43 : vector<2x16x32xf32> to vector<32x32xf32>
    %c4_41 = arith.constant 4 : index
    %c0_42 = arith.constant 0 : index
    %c0_43 = arith.constant 0 : index
    %45 = vector.load %arg2[%c4_41, %c0_42, %c0_43] : memref<5x32x16xf32, #tpu.memory_space<vmem>>, vector<1x32x16xf32>
    %46 = vector.shape_cast %45 : vector<1x32x16xf32> to vector<32x16xf32>
    %cst_44 = arith.constant dense<0.000000e+00> : vector<32x16xf32>
    %47 = tpu.matmul %44, %46, %cst_44 {dimension_numbers = #tpu.dot_dimension_numbers<[1], [0], [0], [1], [0, 0, 1, 1], [], []>} : vector<32x32xf32>, vector<32x16xf32>, vector<32x16xf32> -> vector<32x16xf32>
    %48 = arith.addf %42, %47 : vector<32x16xf32>
    %c0_45 = arith.constant 0 : index
    %c0_46 = arith.constant 0 : index
    %49 = vector.load %arg3[%c0_45, %c0_46] : memref<1x16xf32, #tpu.memory_space<vmem>>, vector<1x16xf32>
    %50 = vector.broadcast %49 : vector<1x16xf32> to vector<32x16xf32>
    %51 = arith.addf %48, %50 : vector<32x16xf32>
    %cst_47 = arith.constant 0.000000e+00 : f32
    %52 = vector.broadcast %cst_47 : f32 to vector<32x16xf32>
    %53 = arith.maximumf %51, %52 : vector<32x16xf32>
    %54 = vector.shape_cast %53 : vector<32x16xf32> to vector<2x16x16xf32>
    %cst_48 = arith.constant dense<0xFF800000> : vector<2x16xf32>
    %55 = vector.multi_reduction <maximumf>, %54, %cst_48 [1] : vector<2x16x16xf32> to vector<2x16xf32>
    %c0_49 = arith.constant 0 : index
    %c0_50 = arith.constant 0 : index
    %56 = vector.load %arg4[%c0_49, %c0_50] : memref<16x4xf32, #tpu.memory_space<vmem>>, vector<16x4xf32>
    %cst_51 = arith.constant dense<0.000000e+00> : vector<2x4xf32>
    %57 = tpu.matmul %55, %56, %cst_51 {dimension_numbers = #tpu.dot_dimension_numbers<[1], [0], [0], [1], [0, 0, 1, 1], [], []>} : vector<2x16xf32>, vector<16x4xf32>, vector<2x4xf32> -> vector<2x4xf32>
    %c0_52 = arith.constant 0 : index
    %c0_53 = arith.constant 0 : index
    %58 = vector.load %arg5[%c0_52, %c0_53] : memref<1x4xf32, #tpu.memory_space<vmem>>, vector<1x4xf32>
    %59 = vector.broadcast %58 : vector<1x4xf32> to vector<2x4xf32>
    %60 = arith.addf %57, %59 : vector<2x4xf32>
    %c0_54 = arith.constant 0 : index
    %c0_55 = arith.constant 0 : index
    %61 = vector.load %arg6[%c0_54, %c0_55] : memref<2x4xf32, #tpu.memory_space<vmem>>, vector<2x4xf32>
    tpu.vector_store %arg6[%c0_54, %c0_55], %60 {strides = array<i32>} : memref<2x4xf32, #tpu.memory_space<vmem>>, vector<2x4xf32>,
    return
  }
}

</mosaic_0001>

<llo_original>
// kernel: textcnn_forward.1
$region0: #{textcnn_forward.1}
  #allocation0 [shape = 'u32[]', space=smem, size = 0x4, offset = 0x4, fixed_abs, tag = 'smem constant byte address 0x4 - core index']
  #allocation1 [shape = 'u32[144,128]{1,0:T(1,128)}', space=vmem, size = 0x12000, scoped, tag = 'internal scratch']
  #allocation2 [shape = 'f32[2,20,32]{2,1,0:T(8,128)}', space=vmem, size = 0x6000, scoped, tag = 'scratch operand']
  %s0 = inlined_call_operand.vmem [shape: s32[32,1], index: 0, kind: input, shape index: {}]
  %s1 = inlined_call_operand.vmem [shape: f32[128,32], index: 1, kind: input, shape index: {}]
  %s2 = inlined_call_operand.vmem [shape: f32[5,32,16], index: 2, kind: input, shape index: {}]
  %s3 = inlined_call_operand.vmem [shape: f32[1,16], index: 3, kind: input, shape index: {}]
  %s4 = inlined_call_operand.vmem [shape: f32[16,4], index: 4, kind: input, shape index: {}]
  %s5 = inlined_call_operand.vmem [shape: f32[1,4], index: 5, kind: input, shape index: {}]
  %s6 = inlined_call_operand.hbm [shape: f32[2,4], index: 6, kind: output, shape index: {}]
  %s7 = sld [smem:[#allocation0]]
  $region34: #{textcnn_forward.1} parent=0
    _
  %s9 = ssub.s32 1, %s7
  %s10 = scalar_select 0, %s9, %s7
  $region1: #{textcnn_forward.1} parent=0
    #allocation3 [shape = 'u8[1024]{0}', space=vmem, size = 0x400, scoped, tag = 'output window, operand 0, single buffered']
    #allocation4 [shape = 's32[1]{0}', space=sflag, size = 0x4, scoped, tag = 'scoped memory for textcnn_forward.1']
    %11 = vsyncpa [#allocation4], 0
    // Predicated region
    $region2: #{textcnn_forward.1} parent=1 // pred_check
      _
    $region3: #{textcnn_forward.1} parent=1 // pred_check_branch
      %13 = sbr.rel (0) target = $region5
    $region4: #{textcnn_forward.1} parent=1 // pred_region
      _
    $region5: #{textcnn_forward.1} parent=1 // pred_fallthru
      _
    // Predicated region
    $region6: #{textcnn_forward.1} parent=1 // pred_check
      _
    $region7: #{textcnn_forward.1} parent=1 // pred_check_branch
      %15 = sbr.rel (0) target = $region9
    $region8: #{textcnn_forward.1} parent=1 // pred_region
      _
    $region9: #{textcnn_forward.1} parent=1 // pred_fallthru
      _
    // Predicated region
    $region10: #{textcnn_forward.1} parent=1 // pred_check
      _
    $region11: #{textcnn_forward.1} parent=1 // pred_check_branch
      %17 = sbr.rel (0) target = $region13
    $region12: #{textcnn_forward.1} parent=1 // pred_region
      _
    $region13: #{textcnn_forward.1} parent=1 // pred_fallthru
      _
    // Predicated region
    $region14: #{textcnn_forward.1} parent=1 // pred_check
      _
    $region15: #{textcnn_forward.1} parent=1 // pred_check_branch
      %19 = sbr.rel (0) target = $region17
    $region16: #{textcnn_forward.1} parent=1 // pred_region
      _
    $region17: #{textcnn_forward.1} parent=1 // pred_fallthru
      _
    // Predicated region
    $region18: #{textcnn_forward.1} parent=1 // pred_check
      _
    $region19: #{textcnn_forward.1} parent=1 // pred_check_branch
      %21 = sbr.rel (0) target = $region21
    $region20: #{textcnn_forward.1} parent=1 // pred_region
      _
    $region21: #{textcnn_forward.1} parent=1 // pred_fallthru
      _
    // Predicated region
    $region22: #{textcnn_forward.1} parent=1 // pred_check
      _
    $region23: #{textcnn_forward.1} parent=1 // pred_check_branch
      %23 = sbr.rel (0) target = $region25
    $region24: #{textcnn_forward.1} parent=1 // pred_region
      _
    $region25: #{textcnn_forward.1} parent=1 // pred_fallthru
      _
    %v24 = vld [vmem:[%s0] sm:$0xff]
    %v25 = vld [vmem:[%s0 + $0x8] sm:$0xff]
    %v26 = vld [vmem:[%s0 + $0x10] sm:$0xff]
    %v27 = vld [vmem:[%s0 + $0x18] sm:$0xff]
    %v28 = vlaneseq
    %v29 = vand.u32 %v28, 127
    %30 = vset.pattern.permute.xlu0 0
    %31 = vperm.xlu0 %30, %v24
    %v32 = vpop.permute.xlu0 %31
    %33 = vset.pattern.permute.xlu0 0
    %34 = vperm.xlu0 %33, %v25
    %v35 = vpop.permute.xlu0 %34
    %36 = vset.pattern.permute.xlu0 0
    %37 = vperm.xlu0 %36, %v26
    %v38 = vpop.permute.xlu0 %37
    %39 = vset.pattern.permute.xlu0 0
    %40 = vperm.xlu0 %39, %v27
    %v41 = vpop.permute.xlu0 %40
    %vm42 = vcmp.eq.s32.totalorder %v32, %v29
    %vm43 = vcmp.eq.s32.totalorder %v35, %v29
    %vm44 = vcmp.eq.s32.totalorder %v38, %v29
    %vm45 = vcmp.eq.s32.totalorder %v41, %v29
    %v46 = vsel %vm42, 1, 0
    %v47 = vsel %vm43, 1, 0
    %v48 = vsel %vm44, 1, 0
    %v49 = vsel %vm45, 1, 0
    %v50 = vcvt.s32.f32 %v46
    %v51 = vcvt.s32.f32 %v47
    %v52 = vcvt.s32.f32 %v48
    %v53 = vcvt.s32.f32 %v49
    %v54 = vld [vmem:[%s1] sm:$0xff]
    %v55 = vld [vmem:[%s1 + $0x8] sm:$0xff]
    %v56 = vld [vmem:[%s1 + $0x10] sm:$0xff]
    %v57 = vld [vmem:[%s1 + $0x18] sm:$0xff]
    %v58 = vld [vmem:[%s1 + $0x20] sm:$0xff]
    %v59 = vld [vmem:[%s1 + $0x28] sm:$0xff]
    %v60 = vld [vmem:[%s1 + $0x30] sm:$0xff]
    %v61 = vld [vmem:[%s1 + $0x38] sm:$0xff]
    %v62 = vld [vmem:[%s1 + $0x40] sm:$0xff]
    %v63 = vld [vmem:[%s1 + $0x48] sm:$0xff]
    %v64 = vld [vmem:[%s1 + $0x50] sm:$0xff]
    %v65 = vld [vmem:[%s1 + $0x58] sm:$0xff]
    %v66 = vld [vmem:[%s1 + $0x60] sm:$0xff]
    %v67 = vld [vmem:[%s1 + $0x68] sm:$0xff]
    %v68 = vld [vmem:[%s1 + $0x70] sm:$0xff]
    %v69 = vld [vmem:[%s1 + $0x78] sm:$0xff]
    %70 = vmatprep.subr.mxu0 0.0
    %71 = vmatpush1.msra.mxu0 %v69
    %72 = vmatprep.subr.mxu0 0.0
    %73 = vmatpush1.msra.mxu0 %v68
    %74 = vmatprep.subr.mxu0 0.0
    %75 = vmatpush1.msra.mxu0 %v67
    %76 = vmatprep.subr.mxu0 0.0
    %77 = vmatpush1.msra.mxu0 %v66
    %78 = vmatprep.subr.mxu0 0.0
    %79 = vmatpush1.msra.mxu0 %v65
    %80 = vmatprep.subr.mxu0 0.0
    %81 = vmatpush1.msra.mxu0 %v64
    %82 = vmatprep.subr.mxu0 0.0
    %83 = vmatpush1.msra.mxu0 %v63
    %84 = vmatprep.subr.mxu0 0.0
    %85 = vmatpush1.msra.mxu0 %v62
    %86 = vmatprep.subr.mxu0 0.0
    %87 = vmatpush1.msra.mxu0 %v61
    %88 = vmatprep.subr.mxu0 0.0
    %89 = vmatpush1.msra.mxu0 %v60
    %90 = vmatprep.subr.mxu0 0.0
    %91 = vmatpush1.msra.mxu0 %v59
    %92 = vmatprep.subr.mxu0 0.0
    %93 = vmatpush1.msra.mxu0 %v58
    %94 = vmatprep.subr.mxu0 0.0
    %95 = vmatpush1.msra.mxu0 %v57
    %96 = vmatprep.subr.mxu0 0.0
    %97 = vmatpush1.msra.mxu0 %v56
    %98 = vmatprep.subr.mxu0 0.0
    %99 = vmatpush1.msra.mxu0 %v55
    %100 = vmatprep.subr.mxu0 0.0
    %101 = vmatpush1.msra.mxu0 %v54
    %102 = vmatprep.subr.mxu0 0.0
    %103 = vmatpush2.msra.mxu0 0.0
    %104 = vmatprep.subr.mxu0 0.0
    %105 = vmatpush2.msra.mxu0 0.0
    %106 = vmatprep.subr.mxu0 0.0
    %107 = vmatpush2.msra.mxu0 0.0
    %108 = vmatprep.subr.mxu0 0.0
    %109 = vmatpush2.msra.mxu0 0.0
    %110 = vmatprep.subr.mxu0 0.0
    %111 = vmatpush2.msra.mxu0 0.0
    %112 = vmatprep.subr.mxu0 0.0
    %113 = vmatpush2.msra.mxu0 0.0
    %114 = vmatprep.subr.mxu0 0.0
    %115 = vmatpush2.msra.mxu0 0.0
    %116 = vmatprep.subr.mxu0 0.0
    %117 = vmatpush2.msra.mxu0 0.0
    %118 = vmatprep.subr.mxu0 0.0
    %119 = vmatpush2.msra.mxu0 0.0
    %120 = vmatprep.subr.mxu0 0.0
    %121 = vmatpush2.msra.mxu0 0.0
    %122 = vmatprep.subr.mxu0 0.0
    %123 = vmatpush2.msra.mxu0 0.0
    %124 = vmatprep.subr.mxu0 0.0
    %125 = vmatpush2.msra.mxu0 0.0
    %126 = vmatprep.subr.mxu0 0.0
    %127 = vmatpush2.msra.mxu0 0.0
    %128 = vmatprep.subr.mxu0 0.0
    %129 = vmatpush2.msra.mxu0 0.0
    %130 = vmatprep.subr.mxu0 0.0
    %131 = vmatpush2.msra.mxu0 0.0
    %132 = vmatprep.subr.mxu0 0.0
    %133 = vmatpush2.msra.mxu0 0.0
    %134 = vmatprep.mubr.f32.mxu0 0.0
    %135 = vmatmul.mubr.f32.gmra.mxu0 %v50
    %v136 = vpop.f32.mrf.mxu0
    %v137 = vadd.f32 0.0, %v136
    %v138 = vpop.f32.mrf.mxu0
    %139 = vmatprep.mubr.f32.mxu0 0.0
    %140 = vmatmul.mubr.f32.gmra.mxu0 %v51
    %v141 = vpop.f32.mrf.mxu0
    %v142 = vadd.f32 0.0, %v141
    %v143 = vpop.f32.mrf.mxu0
    %144 = vmatprep.mubr.f32.mxu0 0.0
    %145 = vmatmul.mubr.f32.gmra.mxu0 %v52
    %v146 = vpop.f32.mrf.mxu0
    %v147 = vadd.f32 0.0, %v146
    %v148 = vpop.f32.mrf.mxu0
    %149 = vmatprep.mubr.f32.mxu0 0.0
    %150 = vmatmul.mubr.f32.gmra.mxu0 %v53
    %v151 = vpop.f32.mrf.mxu0
    %v152 = vadd.f32 0.0, %v151
    %v153 = vpop.f32.mrf.mxu0
    %154 = vdwg.mxu0
    %vm155 = vcmask 261120
    %156 = vst.msk [vmem:[#allocation2] sm:$0xff] %vm155, 0.0
    %157 = vst.msk [vmem:[#allocation2 + $0x8] sm:$0xff] %vm155, 0.0
    %vm158 = vcmask 257024
    %159 = vst.msk [vmem:[#allocation2 + $0x10] sm:$0xf] %vm158, 0.0
    %160 = vst.msk [vmem:[#allocation2 + $0x18] sm:$0xff] %vm155, 0.0
    %161 = vst.msk [vmem:[#allocation2 + $0x20] sm:$0xff] %vm155, 0.0
    %162 = vst.msk [vmem:[#allocation2 + $0x28] sm:$0xf] %vm158, 0.0
    %163 = vst.msk [vmem:[#allocation2 + $0x2] sm:$0xff] %vm155, %v137
    %164 = vst.msk [vmem:[#allocation2 + $0xa] sm:$0xff] %vm155, %v142
    %s165 = scalar_lea.vmem [#allocation2], 24
    %166 = vst.msk [vmem:[%s165 + $0x2] sm:$0xff] %vm155, %v147
    %167 = vst.msk [vmem:[%s165 + $0xa] sm:$0xff] %vm155, %v152
    %v168 = vld [vmem:[#allocation2] sm:$0xff]
    %v169 = vld [vmem:[#allocation2 + $0x8] sm:$0xff]
    %v170 = vld [vmem:[#allocation2 + $0x18] sm:$0xff]
    %v171 = vld [vmem:[#allocation2 + $0x20] sm:$0xff]
    %v172 = vld [vmem:[%s2] sm:$0xff]
    %v173 = vld [vmem:[%s2 + $0x8] sm:$0xff]
    %v174 = vld [vmem:[%s2 + $0x10] sm:$0xff]
    %v175 = vld [vmem:[%s2 + $0x18] sm:$0xff]
    %v176 = vld [vmem:[#allocation2 + $0x1] sm:$0xff]
    %v177 = vld [vmem:[#allocation2 + $0x9] sm:$0xff]
    %v178 = vld [vmem:[#allocation2 + $0x19] sm:$0xff]
    %v179 = vld [vmem:[#allocation2 + $0x21] sm:$0xff]
    %s180 = scalar_lea.vmem %s2, 32
    %v181 = vld [vmem:[%s180] sm:$0xff]
    %v182 = vld [vmem:[%s180 + $0x8] sm:$0xff]
    %v183 = vld [vmem:[%s180 + $0x10] sm:$0xff]
    %v184 = vld [vmem:[%s180 + $0x18] sm:$0xff]
    %v186 = vsel %vm155, %v176, 0
    %v189 = vsel %vm155, %v177, 0
    %v192 = vsel %vm155, %v178, 0
    %v195 = vsel %vm155, %v179, 0
    %197 = vmatprep.subr.mxu0 0.0
    %198 = vmatpush1.msra.mxu0 0.0
    %199 = vmatprep.subr.mxu0 0.0
    %200 = vmatpush1.msra.mxu0 0.0
    %201 = vmatprep.subr.mxu0 0.0
    %202 = vmatpush1.msra.mxu0 0.0
    %203 = vmatprep.subr.mxu0 0.0
    %204 = vmatpush1.msra.mxu0 0.0
    %205 = vmatprep.subr.mxu0 0.0
    %206 = vmatpush1.msra.mxu0 0.0
    %207 = vmatprep.subr.mxu0 0.0
    %208 = vmatpush1.msra.mxu0 0.0
    %209 = vmatprep.subr.mxu0 0.0
    %210 = vmatpush1.msra.mxu0 0.0
    %211 = vmatprep.subr.mxu0 0.0
    %212 = vmatpush1.msra.mxu0 0.0
    %213 = vmatprep.subr.mxu0 0.0
    %214 = vmatpush1.msra.mxu0 0.0
    %215 = vmatprep.subr.mxu0 0.0
    %216 = vmatpush1.msra.mxu0 0.0
    %217 = vmatprep.subr.mxu0 0.0
    %218 = vmatpush1.msra.mxu0 0.0
    %219 = vmatprep.subr.mxu0 0.0
    %220 = vmatpush1.msra.mxu0 0.0
    %221 = vmatprep.subr.mxu0 0.0
    %222 = vmatpush1.msra.mxu0 %v184
    %223 = vmatprep.subr.mxu0 0.0
    %224 = vmatpush1.msra.mxu0 %v183
    %225 = vmatprep.subr.mxu0 0.0
    %226 = vmatpush1.msra.mxu0 %v182
    %227 = vmatprep.subr.mxu0 0.0
    %228 = vmatpush1.msra.mxu0 %v181
    %229 = vmatprep.subr.mxu0 0.0
    %230 = vmatpush2.msra.mxu0 0.0
    %231 = vmatprep.subr.mxu0 0.0
    %232 = vmatpush2.msra.mxu0 0.0
    %233 = vmatprep.subr.mxu0 0.0
    %234 = vmatpush2.msra.mxu0 0.0
    %235 = vmatprep.subr.mxu0 0.0
    %236 = vmatpush2.msra.mxu0 0.0
    %237 = vmatprep.subr.mxu0 0.0
    %238 = vmatpush2.msra.mxu0 0.0
    %239 = vmatprep.subr.mxu0 0.0
    %240 = vmatpush2.msra.mxu0 0.0
    %241 = vmatprep.subr.mxu0 0.0
    %242 = vmatpush2.msra.mxu0 0.0
    %243 = vmatprep.subr.mxu0 0.0
    %244 = vmatpush2.msra.mxu0 0.0
    %245 = vmatprep.subr.mxu0 0.0
    %246 = vmatpush2.msra.mxu0 0.0
    %247 = vmatprep.subr.mxu0 0.0
    %248 = vmatpush2.msra.mxu0 0.0
    %249 = vmatprep.subr.mxu0 0.0
    %250 = vmatpush2.msra.mxu0 0.0
    %251 = vmatprep.subr.mxu0 0.0
    %252 = vmatpush2.msra.mxu0 0.0
    %253 = vmatprep.subr.mxu0 0.0
    %254 = vmatpush2.msra.mxu0 0.0
    %255 = vmatprep.subr.mxu0 0.0
    %256 = vmatpush2.msra.mxu0 0.0
    %257 = vmatprep.subr.mxu0 0.0
    %258 = vmatpush2.msra.mxu0 0.0
    %259 = vmatprep.subr.mxu0 0.0
    %260 = vmatpush2.msra.mxu0 0.0
    %261 = vmatprep.mubr.f32.mxu0 0.0
    %262 = vmatmul.mubr.f32.gmra.mxu0 %v186
    %v263 = vpop.f32.mrf.mxu0
    %v264 = vadd.f32 0.0, %v263
    %v265 = vpop.f32.mrf.mxu0
    %266 = vmatprep.mubr.f32.mxu0 0.0
    %267 = vmatmul.mubr.f32.gmra.mxu0 %v189
    %v268 = vpop.f32.mrf.mxu0
    %v269 = vadd.f32 0.0, %v268
    %v270 = vpop.f32.mrf.mxu0
    %271 = vmatprep.mubr.f32.mxu0 0.0
    %272 = vmatmul.mubr.f32.gmra.mxu0 %v192
    %v273 = vpop.f32.mrf.mxu0
    %v274 = vadd.f32 0.0, %v273
    %v275 = vpop.f32.mrf.mxu0
    %276 = vmatprep.mubr.f32.mxu0 0.0
    %277 = vmatmul.mubr.f32.gmra.mxu0 %v195
    %v278 = vpop.f32.mrf.mxu0
    %v279 = vadd.f32 0.0, %v278
    %v280 = vpop.f32.mrf.mxu0
    %281 = vdwg.mxu0
    %v283 = vsel %vm155, %v168, 0
    %v286 = vsel %vm155, %v169, 0
    %v289 = vsel %vm155, %v170, 0
    %v292 = vsel %vm155, %v171, 0
    %294 = vmatprep.subr.mxu0 0.0
    %295 = vmatpush1.msra.mxu0 0.0
    %296 = vmatprep.subr.mxu0 0.0
    %297 = vmatpush1.msra.mxu0 0.0
    %298 = vmatprep.subr.mxu0 0.0
    %299 = vmatpush1.msra.mxu0 0.0
    %300 = vmatprep.subr.mxu0 0.0
    %301 = vmatpush1.msra.mxu0 0.0
    %302 = vmatprep.subr.mxu0 0.0
    %303 = vmatpush1.msra.mxu0 0.0
    %304 = vmatprep.subr.mxu0 0.0
    %305 = vmatpush1.msra.mxu0 0.0
    %306 = vmatprep.subr.mxu0 0.0
    %307 = vmatpush1.msra.mxu0 0.0
    %308 = vmatprep.subr.mxu0 0.0
    %309 = vmatpush1.msra.mxu0 0.0
    %310 = vmatprep.subr.mxu0 0.0
    %311 = vmatpush1.msra.mxu0 0.0
    %312 = vmatprep.subr.mxu0 0.0
    %313 = vmatpush1.msra.mxu0 0.0
    %314 = vmatprep.subr.mxu0 0.0
    %315 = vmatpush1.msra.mxu0 0.0
    %316 = vmatprep.subr.mxu0 0.0
    %317 = vmatpush1.msra.mxu0 0.0
    %318 = vmatprep.subr.mxu0 0.0
    %319 = vmatpush1.msra.mxu0 %v175
    %320 = vmatprep.subr.mxu0 0.0
    %321 = vmatpush1.msra.mxu0 %v174
    %322 = vmatprep.subr.mxu0 0.0
    %323 = vmatpush1.msra.mxu0 %v173
    %324 = vmatprep.subr.mxu0 0.0
    %325 = vmatpush1.msra.mxu0 %v172
    %326 = vmatprep.subr.mxu0 0.0
    %327 = vmatpush2.msra.mxu0 0.0
    %328 = vmatprep.subr.mxu0 0.0
    %329 = vmatpush2.msra.mxu0 0.0
    %330 = vmatprep.subr.mxu0 0.0
    %331 = vmatpush2.msra.mxu0 0.0
    %332 = vmatprep.subr.mxu0 0.0
    %333 = vmatpush2.msra.mxu0 0.0
    %334 = vmatprep.subr.mxu0 0.0
    %335 = vmatpush2.msra.mxu0 0.0
    %336 = vmatprep.subr.mxu0 0.0
    %337 = vmatpush2.msra.mxu0 0.0
    %338 = vmatprep.subr.mxu0 0.0
    %339 = vmatpush2.msra.mxu0 0.0
    %340 = vmatprep.subr.mxu0 0.0
    %341 = vmatpush2.msra.mxu0 0.0
    %342 = vmatprep.subr.mxu0 0.0
    %343 = vmatpush2.msra.mxu0 0.0
    %344 = vmatprep.subr.mxu0 0.0
    %345 = vmatpush2.msra.mxu0 0.0
    %346 = vmatprep.subr.mxu0 0.0
    %347 = vmatpush2.msra.mxu0 0.0
    %348 = vmatprep.subr.mxu0 0.0
    %349 = vmatpush2.msra.mxu0 0.0
    %350 = vmatprep.subr.mxu0 0.0
    %351 = vmatpush2.msra.mxu0 0.0
    %352 = vmatprep.subr.mxu0 0.0
    %353 = vmatpush2.msra.mxu0 0.0
    %354 = vmatprep.subr.mxu0 0.0
    %355 = vmatpush2.msra.mxu0 0.0
    %356 = vmatprep.subr.mxu0 0.0
    %357 = vmatpush2.msra.mxu0 0.0
    %358 = vmatprep.mubr.f32.mxu0 0.0
    %359 = vmatmul.mubr.f32.gmra.mxu0 %v283
    %v360 = vpop.f32.mrf.mxu0
    %v361 = vadd.f32 %v264, %v360
    %v362 = vpop.f32.mrf.mxu0
    %363 = vmatprep.mubr.f32.mxu0 0.0
    %364 = vmatmul.mubr.f32.gmra.mxu0 %v286
    %v365 = vpop.f32.mrf.mxu0
    %v366 = vadd.f32 %v269, %v365
    %v367 = vpop.f32.mrf.mxu0
    %368 = vmatprep.mubr.f32.mxu0 0.0
    %369 = vmatmul.mubr.f32.gmra.mxu0 %v289
    %v370 = vpop.f32.mrf.mxu0
    %v371 = vadd.f32 %v274, %v370
    %v372 = vpop.f32.mrf.mxu0
    %373 = vmatprep.mubr.f32.mxu0 0.0
    %374 = vmatmul.mubr.f32.gmra.mxu0 %v292
    %v375 = vpop.f32.mrf.mxu0
    %v376 = vadd.f32 %v279, %v375
    %v377 = vpop.f32.mrf.mxu0
    %378 = vdwg.mxu0
    %v379 = vld [vmem:[#allocation2 + $0x2] sm:$0xff]
    %v380 = vld [vmem:[#allocation2 + $0xa] sm:$0xff]
    %v381 = vld [vmem:[#allocation2 + $0x1a] sm:$0xff]
    %v382 = vld [vmem:[#allocation2 + $0x22] sm:$0xff]
    %s383 = scalar_lea.vmem %s2, 64
    %v384 = vld [vmem:[%s383] sm:$0xff]
    %v385 = vld [vmem:[%s383 + $0x8] sm:$0xff]
    %v386 = vld [vmem:[%s383 + $0x10] sm:$0xff]
    %v387 = vld [vmem:[%s383 + $0x18] sm:$0xff]
    %v389 = vsel %vm155, %v379, 0
    %v392 = vsel %vm155, %v380, 0
    %v395 = vsel %vm155, %v381, 0
    %v398 = vsel %vm155, %v382, 0
    %400 = vmatprep.subr.mxu0 0.0
    %401 = vmatpush1.msra.mxu0 0.0
    %402 = vmatprep.subr.mxu0 0.0
    %403 = vmatpush1.msra.mxu0 0.0
    %404 = vmatprep.subr.mxu0 0.0
    %405 = vmatpush1.msra.mxu0 0.0
    %406 = vmatprep.subr.mxu0 0.0
    %407 = vmatpush1.msra.mxu0 0.0
    %408 = vmatprep.subr.mxu0 0.0
    %409 = vmatpush1.msra.mxu0 0.0
    %410 = vmatprep.subr.mxu0 0.0
    %411 = vmatpush1.msra.mxu0 0.0
    %412 = vmatprep.subr.mxu0 0.0
    %413 = vmatpush1.msra.mxu0 0.0
    %414 = vmatprep.subr.mxu0 0.0
    %415 = vmatpush1.msra.mxu0 0.0
    %416 = vmatprep.subr.mxu0 0.0
    %417 = vmatpush1.msra.mxu0 0.0
    %418 = vmatprep.subr.mxu0 0.0
    %419 = vmatpush1.msra.mxu0 0.0
    %420 = vmatprep.subr.mxu0 0.0
    %421 = vmatpush1.msra.mxu0 0.0
    %422 = vmatprep.subr.mxu0 0.0
    %423 = vmatpush1.msra.mxu0 0.0
    %424 = vmatprep.subr.mxu0 0.0
    %425 = vmatpush1.msra.mxu0 %v387
    %426 = vmatprep.subr.mxu0 0.0
    %427 = vmatpush1.msra.mxu0 %v386
    %428 = vmatprep.subr.mxu0 0.0
    %429 = vmatpush1.msra.mxu0 %v385
    %430 = vmatprep.subr.mxu0 0.0
    %431 = vmatpush1.msra.mxu0 %v384
    %432 = vmatprep.subr.mxu0 0.0
    %433 = vmatpush2.msra.mxu0 0.0
    %434 = vmatprep.subr.mxu0 0.0
    %435 = vmatpush2.msra.mxu0 0.0
    %436 = vmatprep.subr.mxu0 0.0
    %437 = vmatpush2.msra.mxu0 0.0
    %438 = vmatprep.subr.mxu0 0.0
    %439 = vmatpush2.msra.mxu0 0.0
    %440 = vmatprep.subr.mxu0 0.0
    %441 = vmatpush2.msra.mxu0 0.0
    %442 = vmatprep.subr.mxu0 0.0
    %443 = vmatpush2.msra.mxu0 0.0
    %444 = vmatprep.subr.mxu0 0.0
    %445 = vmatpush2.msra.mxu0 0.0
    %446 = vmatprep.subr.mxu0 0.0
    %447 = vmatpush2.msra.mxu0 0.0
    %448 = vmatprep.subr.mxu0 0.0
    %449 = vmatpush2.msra.mxu0 0.0
    %450 = vmatprep.subr.mxu0 0.0
    %451 = vmatpush2.msra.mxu0 0.0
    %452 = vmatprep.subr.mxu0 0.0
    %453 = vmatpush2.msra.mxu0 0.0
    %454 = vmatprep.subr.mxu0 0.0
    %455 = vmatpush2.msra.mxu0 0.0
    %456 = vmatprep.subr.mxu0 0.0
    %457 = vmatpush2.msra.mxu0 0.0
    %458 = vmatprep.subr.mxu0 0.0
    %459 = vmatpush2.msra.mxu0 0.0
    %460 = vmatprep.subr.mxu0 0.0
    %461 = vmatpush2.msra.mxu0 0.0
    %462 = vmatprep.subr.mxu0 0.0
    %463 = vmatpush2.msra.mxu0 0.0
    %464 = vmatprep.mubr.f32.mxu0 0.0
    %465 = vmatmul.mubr.f32.gmra.mxu0 %v389
    %v466 = vpop.f32.mrf.mxu0
    %v467 = vadd.f32 0.0, %v466
    %v468 = vpop.f32.mrf.mxu0
    %469 = vmatprep.mubr.f32.mxu0 0.0
    %470 = vmatmul.mubr.f32.gmra.mxu0 %v392
    %v471 = vpop.f32.mrf.mxu0
    %v472 = vadd.f32 0.0, %v471
    %v473 = vpop.f32.mrf.mxu0
    %474 = vmatprep.mubr.f32.mxu0 0.0
    %475 = vmatmul.mubr.f32.gmra.mxu0 %v395
    %v476 = vpop.f32.mrf.mxu0
    %v477 = vadd.f32 0.0, %v476
    %v478 = vpop.f32.mrf.mxu0
    %479 = vmatprep.mubr.f32.mxu0 0.0
    %480 = vmatmul.mubr.f32.gmra.mxu0 %v398
    %v481 = vpop.f32.mrf.mxu0
    %v482 = vadd.f32 0.0, %v481
    %v483 = vpop.f32.mrf.mxu0
    %484 = vdwg.mxu0
    %v485 = vadd.f32 %v361, %v467
    %v486 = vadd.f32 %v366, %v472
    %v487 = vadd.f32 %v371, %v477
    %v488 = vadd.f32 %v376, %v482
    %v489 = vld [vmem:[#allocation2 + $0x3] sm:$0xff]
    %v490 = vld [vmem:[#allocation2 + $0xb] sm:$0xff]
    %v491 = vld [vmem:[#allocation2 + $0x1b] sm:$0xff]
    %v492 = vld [vmem:[#allocation2 + $0x23] sm:$0xff]
    %s493 = scalar_lea.vmem %s2, 96
    %v494 = vld [vmem:[%s493] sm:$0xff]
    %v495 = vld [vmem:[%s493 + $0x8] sm:$0xff]
    %v496 = vld [vmem:[%s493 + $0x10] sm:$0xff]
    %v497 = vld [vmem:[%s493 + $0x18] sm:$0xff]
    %v499 = vsel %vm155, %v489, 0
    %v502 = vsel %vm155, %v490, 0
    %v505 = vsel %vm155, %v491, 0
    %v508 = vsel %vm155, %v492, 0
    %510 = vmatprep.subr.mxu0 0.0
    %511 = vmatpush1.msra.mxu0 0.0
    %512 = vmatprep.subr.mxu0 0.0
    %513 = vmatpush1.msra.mxu0 0.0
    %514 = vmatprep.subr.mxu0 0.0
    %515 = vmatpush1.msra.mxu0 0.0
    %516 = vmatprep.subr.mxu0 0.0
    %517 = vmatpush1.msra.mxu0 0.0
    %518 = vmatprep.subr.mxu0 0.0
    %519 = vmatpush1.msra.mxu0 0.0
    %520 = vmatprep.subr.mxu0 0.0
    %521 = vmatpush1.msra.mxu0 0.0
    %522 = vmatprep.subr.mxu0 0.0
    %523 = vmatpush1.msra.mxu0 0.0
    %524 = vmatprep.subr.mxu0 0.0
    %525 = vmatpush1.msra.mxu0 0.0
    %526 = vmatprep.subr.mxu0 0.0
    %527 = vmatpush1.msra.mxu0 0.0
    %528 = vmatprep.subr.mxu0 0.0
    %529 = vmatpush1.msra.mxu0 0.0
    %530 = vmatprep.subr.mxu0 0.0
    %531 = vmatpush1.msra.mxu0 0.0
    %532 = vmatprep.subr.mxu0 0.0
    %533 = vmatpush1.msra.mxu0 0.0
    %534 = vmatprep.subr.mxu0 0.0
    %535 = vmatpush1.msra.mxu0 %v497
    %536 = vmatprep.subr.mxu0 0.0
    %537 = vmatpush1.msra.mxu0 %v496
    %538 = vmatprep.subr.mxu0 0.0
    %539 = vmatpush1.msra.mxu0 %v495
    %540 = vmatprep.subr.mxu0 0.0
    %541 = vmatpush1.msra.mxu0 %v494
    %542 = vmatprep.subr.mxu0 0.0
    %543 = vmatpush2.msra.mxu0 0.0
    %544 = vmatprep.subr.mxu0 0.0
    %545 = vmatpush2.msra.mxu0 0.0
    %546 = vmatprep.subr.mxu0 0.0
    %547 = vmatpush2.msra.mxu0 0.0
    %548 = vmatprep.subr.mxu0 0.0
    %549 = vmatpush2.msra.mxu0 0.0
    %550 = vmatprep.subr.mxu0 0.0
    %551 = vmatpush2.msra.mxu0 0.0
    %552 = vmatprep.subr.mxu0 0.0
    %553 = vmatpush2.msra.mxu0 0.0
    %554 = vmatprep.subr.mxu0 0.0
    %555 = vmatpush2.msra.mxu0 0.0
    %556 = vmatprep.subr.mxu0 0.0
    %557 = vmatpush2.msra.mxu0 0.0
    %558 = vmatprep.subr.mxu0 0.0
    %559 = vmatpush2.msra.mxu0 0.0
    %560 = vmatprep.subr.mxu0 0.0
    %561 = vmatpush2.msra.mxu0 0.0
    %562 = vmatprep.subr.mxu0 0.0
    %563 = vmatpush2.msra.mxu0 0.0
    %564 = vmatprep.subr.mxu0 0.0
    %565 = vmatpush2.msra.mxu0 0.0
    %566 = vmatprep.subr.mxu0 0.0
    %567 = vmatpush2.msra.mxu0 0.0
    %568 = vmatprep.subr.mxu0 0.0
    %569 = vmatpush2.msra.mxu0 0.0
    %570 = vmatprep.subr.mxu0 0.0
    %571 = vmatpush2.msra.mxu0 0.0
    %572 = vmatprep.subr.mxu0 0.0
    %573 = vmatpush2.msra.mxu0 0.0
    %574 = vmatprep.mubr.f32.mxu0 0.0
    %575 = vmatmul.mubr.f32.gmra.mxu0 %v499
    %v576 = vpop.f32.mrf.mxu0
    %v577 = vadd.f32 0.0, %v576
    %v578 = vpop.f32.mrf.mxu0
    %579 = vmatprep.mubr.f32.mxu0 0.0
    %580 = vmatmul.mubr.f32.gmra.mxu0 %v502
    %v581 = vpop.f32.mrf.mxu0
    %v582 = vadd.f32 0.0, %v581
    %v583 = vpop.f32.mrf.mxu0
    %584 = vmatprep.mubr.f32.mxu0 0.0
    %585 = vmatmul.mubr.f32.gmra.mxu0 %v505
    %v586 = vpop.f32.mrf.mxu0
    %v587 = vadd.f32 0.0, %v586
    %v588 = vpop.f32.mrf.mxu0
    %589 = vmatprep.mubr.f32.mxu0 0.0
    %590 = vmatmul.mubr.f32.gmra.mxu0 %v508
    %v591 = vpop.f32.mrf.mxu0
    %v592 = vadd.f32 0.0, %v591
    %v593 = vpop.f32.mrf.mxu0
    %594 = vdwg.mxu0
    %v595 = vadd.f32 %v485, %v577
    %v596 = vadd.f32 %v486, %v582
    %v597 = vadd.f32 %v487, %v587
    %v598 = vadd.f32 %v488, %v592
    %v599 = vld [vmem:[#allocation2 + $0x4] sm:$0xff]
    %v600 = vld [vmem:[#allocation2 + $0xc] sm:$0xff]
    %v601 = vld [vmem:[#allocation2 + $0x1c] sm:$0xff]
    %v602 = vld [vmem:[#allocation2 + $0x24] sm:$0xff]
    %s603 = scalar_lea.vmem %s2, 128
    %v604 = vld [vmem:[%s603] sm:$0xff]
    %v605 = vld [vmem:[%s603 + $0x8] sm:$0xff]
    %v606 = vld [vmem:[%s603 + $0x10] sm:$0xff]
    %v607 = vld [vmem:[%s603 + $0x18] sm:$0xff]
    %v609 = vsel %vm155, %v599, 0
    %v612 = vsel %vm155, %v600, 0
    %v615 = vsel %vm155, %v601, 0
    %v618 = vsel %vm155, %v602, 0
    %620 = vmatprep.subr.mxu0 0.0
    %621 = vmatpush1.msra.mxu0 0.0
    %622 = vmatprep.subr.mxu0 0.0
    %623 = vmatpush1.msra.mxu0 0.0
    %624 = vmatprep.subr.mxu0 0.0
    %625 = vmatpush1.msra.mxu0 0.0
    %626 = vmatprep.subr.mxu0 0.0
    %627 = vmatpush1.msra.mxu0 0.0
    %628 = vmatprep.subr.mxu0 0.0
    %629 = vmatpush1.msra.mxu0 0.0
    %630 = vmatprep.subr.mxu0 0.0
    %631 = vmatpush1.msra.mxu0 0.0
    %632 = vmatprep.subr.mxu0 0.0
    %633 = vmatpush1.msra.mxu0 0.0
    %634 = vmatprep.subr.mxu0 0.0
    %635 = vmatpush1.msra.mxu0 0.0
    %636 = vmatprep.subr.mxu0 0.0
    %637 = vmatpush1.msra.mxu0 0.0
    %638 = vmatprep.subr.mxu0 0.0
    %639 = vmatpush1.msra.mxu0 0.0
    %640 = vmatprep.subr.mxu0 0.0
    %641 = vmatpush1.msra.mxu0 0.0
    %642 = vmatprep.subr.mxu0 0.0
    %643 = vmatpush1.msra.mxu0 0.0
    %644 = vmatprep.subr.mxu0 0.0
    %645 = vmatpush1.msra.mxu0 %v607
    %646 = vmatprep.subr.mxu0 0.0
    %647 = vmatpush1.msra.mxu0 %v606
    %648 = vmatprep.subr.mxu0 0.0
    %649 = vmatpush1.msra.mxu0 %v605
    %650 = vmatprep.subr.mxu0 0.0
    %651 = vmatpush1.msra.mxu0 %v604
    %652 = vmatprep.subr.mxu0 0.0
    %653 = vmatpush2.msra.mxu0 0.0
    %654 = vmatprep.subr.mxu0 0.0
    %655 = vmatpush2.msra.mxu0 0.0
    %656 = vmatprep.subr.mxu0 0.0
    %657 = vmatpush2.msra.mxu0 0.0
    %658 = vmatprep.subr.mxu0 0.0
    %659 = vmatpush2.msra.mxu0 0.0
    %660 = vmatprep.subr.mxu0 0.0
    %661 = vmatpush2.msra.mxu0 0.0
    %662 = vmatprep.subr.mxu0 0.0
    %663 = vmatpush2.msra.mxu0 0.0
    %664 = vmatprep.subr.mxu0 0.0
    %665 = vmatpush2.msra.mxu0 0.0
    %666 = vmatprep.subr.mxu0 0.0
    %667 = vmatpush2.msra.mxu0 0.0
    %668 = vmatprep.subr.mxu0 0.0
    %669 = vmatpush2.msra.mxu0 0.0
    %670 = vmatprep.subr.mxu0 0.0
    %671 = vmatpush2.msra.mxu0 0.0
    %672 = vmatprep.subr.mxu0 0.0
    %673 = vmatpush2.msra.mxu0 0.0
    %674 = vmatprep.subr.mxu0 0.0
    %675 = vmatpush2.msra.mxu0 0.0
    %676 = vmatprep.subr.mxu0 0.0
    %677 = vmatpush2.msra.mxu0 0.0
    %678 = vmatprep.subr.mxu0 0.0
    %679 = vmatpush2.msra.mxu0 0.0
    %680 = vmatprep.subr.mxu0 0.0
    %681 = vmatpush2.msra.mxu0 0.0
    %682 = vmatprep.subr.mxu0 0.0
    %683 = vmatpush2.msra.mxu0 0.0
    %684 = vmatprep.mubr.f32.mxu0 0.0
    %685 = vmatmul.mubr.f32.gmra.mxu0 %v609
    %v686 = vpop.f32.mrf.mxu0
    %v687 = vadd.f32 0.0, %v686
    %v688 = vpop.f32.mrf.mxu0
    %689 = vmatprep.mubr.f32.mxu0 0.0
    %690 = vmatmul.mubr.f32.gmra.mxu0 %v612
    %v691 = vpop.f32.mrf.mxu0
    %v692 = vadd.f32 0.0, %v691
    %v693 = vpop.f32.mrf.mxu0
    %694 = vmatprep.mubr.f32.mxu0 0.0
    %695 = vmatmul.mubr.f32.gmra.mxu0 %v615
    %v696 = vpop.f32.mrf.mxu0
    %v697 = vadd.f32 0.0, %v696
    %v698 = vpop.f32.mrf.mxu0
    %699 = vmatprep.mubr.f32.mxu0 0.0
    %700 = vmatmul.mubr.f32.gmra.mxu0 %v618
    %v701 = vpop.f32.mrf.mxu0
    %v702 = vadd.f32 0.0, %v701
    %v703 = vpop.f32.mrf.mxu0
    %704 = vdwg.mxu0
    %v705 = vadd.f32 %v595, %v687
    %v706 = vadd.f32 %v596, %v692
    %v707 = vadd.f32 %v597, %v697
    %v708 = vadd.f32 %v598, %v702
    %v709 = vld [vmem:[%s3] sm:$0x1]
    %v711 = vlaneseq
    %v712 = vshrl.u32 %v711, 7
    %v713 = vsub.s32 0, %v712
    %v714 = vrot.slane %v709, %v713
    %v716 = vadd.f32 %v705, %v714
    %v717 = vadd.f32 %v706, %v714
    %v718 = vadd.f32 %v707, %v714
    %v719 = vadd.f32 %v708, %v714
    %v720 = vmax.f32 %v716, 0.0
    %v721 = vmax.f32 %v717, 0.0
    %v722 = vmax.f32 %v718, 0.0
    %v723 = vmax.f32 %v719, 0.0
    %vm724 = vcmask 130048
    %v725 = vsel %vm724, %v720, -inf
    %v726 = vsel %vm724, %v721, -inf
    %v727 = vmax.f32 %v725, %v726
    %v728 = vrot.slane %v727, 4
    %v729 = vmax.f32 %v727, %v728
    %v730 = vrot.slane %v729, 2
    %v731 = vmax.f32 %v729, %v730
    %v732 = vrot.slane %v731, 1
    %v733 = vmax.f32 %v731, %v732
    %v734 = vsel %vm724, %v722, -inf
    %v735 = vsel %vm724, %v723, -inf
    %v736 = vmax.f32 %v734, %v735
    %v737 = vrot.slane %v736, 4
    %v738 = vmax.f32 %v736, %v737
    %v739 = vrot.slane %v738, 2
    %v740 = vmax.f32 %v738, %v739
    %v741 = vrot.slane %v740, 1
    %v742 = vmax.f32 %v740, %v741
    %v743 = vld [vmem:[%s4] sm:$0xff]
    %v744 = vld [vmem:[%s4 + $0x8] sm:$0xff]
    %v745 = vld [vmem:[%s5] sm:$0x1]
    %v747 = vlaneseq
    %v748 = vshrl.u32 %v747, 7
    %v749 = vsub.s32 0, %v748
    %v750 = vrot.slane %v745, %v749
    %vm754 = vcmask 1041409
    %v755 = vsel %vm754, %v742, %v733
    %v756 = vsel %vm724, %v755, 0
    %758 = vmatprep.subr.mxu0 0.0
    %759 = vmatpush1.msra.mxu0 0.0
    %760 = vmatprep.subr.mxu0 0.0
    %761 = vmatpush1.msra.mxu0 0.0
    %762 = vmatprep.subr.mxu0 0.0
    %763 = vmatpush1.msra.mxu0 0.0
    %764 = vmatprep.subr.mxu0 0.0
    %765 = vmatpush1.msra.mxu0 0.0
    %766 = vmatprep.subr.mxu0 0.0
    %767 = vmatpush1.msra.mxu0 0.0
    %768 = vmatprep.subr.mxu0 0.0
    %769 = vmatpush1.msra.mxu0 0.0
    %770 = vmatprep.subr.mxu0 0.0
    %771 = vmatpush1.msra.mxu0 0.0
    %772 = vmatprep.subr.mxu0 0.0
    %773 = vmatpush1.msra.mxu0 0.0
    %774 = vmatprep.subr.mxu0 0.0
    %775 = vmatpush1.msra.mxu0 0.0
    %776 = vmatprep.subr.mxu0 0.0
    %777 = vmatpush1.msra.mxu0 0.0
    %778 = vmatprep.subr.mxu0 0.0
    %779 = vmatpush1.msra.mxu0 0.0
    %780 = vmatprep.subr.mxu0 0.0
    %781 = vmatpush1.msra.mxu0 0.0
    %782 = vmatprep.subr.mxu0 0.0
    %783 = vmatpush1.msra.mxu0 0.0
    %784 = vmatprep.subr.mxu0 0.0
    %785 = vmatpush1.msra.mxu0 0.0
    %786 = vmatprep.subr.mxu0 0.0
    %787 = vmatpush1.msra.mxu0 %v744
    %788 = vmatprep.subr.mxu0 0.0
    %789 = vmatpush1.msra.mxu0 %v743
    %790 = vmatprep.subr.mxu0 0.0
    %791 = vmatpush2.msra.mxu0 0.0
    %792 = vmatprep.subr.mxu0 0.0
    %793 = vmatpush2.msra.mxu0 0.0
    %794 = vmatprep.subr.mxu0 0.0
    %795 = vmatpush2.msra.mxu0 0.0
    %796 = vmatprep.subr.mxu0 0.0
    %797 = vmatpush2.msra.mxu0 0.0
    %798 = vmatprep.subr.mxu0 0.0
    %799 = vmatpush2.msra.mxu0 0.0
    %800 = vmatprep.subr.mxu0 0.0
    %801 = vmatpush2.msra.mxu0 0.0
    %802 = vmatprep.subr.mxu0 0.0
    %803 = vmatpush2.msra.mxu0 0.0
    %804 = vmatprep.subr.mxu0 0.0
    %805 = vmatpush2.msra.mxu0 0.0
    %806 = vmatprep.subr.mxu0 0.0
    %807 = vmatpush2.msra.mxu0 0.0
    %808 = vmatprep.subr.mxu0 0.0
    %809 = vmatpush2.msra.mxu0 0.0
    %810 = vmatprep.subr.mxu0 0.0
    %811 = vmatpush2.msra.mxu0 0.0
    %812 = vmatprep.subr.mxu0 0.0
    %813 = vmatpush2.msra.mxu0 0.0
    %814 = vmatprep.subr.mxu0 0.0
    %815 = vmatpush2.msra.mxu0 0.0
    %816 = vmatprep.subr.mxu0 0.0
    %817 = vmatpush2.msra.mxu0 0.0
    %818 = vmatprep.subr.mxu0 0.0
    %819 = vmatpush2.msra.mxu0 0.0
    %820 = vmatprep.subr.mxu0 0.0
    %821 = vmatpush2.msra.mxu0 0.0
    %822 = vmatprep.mubr.f32.mxu0 0.0
    %823 = vmatmul.mubr.f32.gmra.mxu0 %v756
    %v824 = vpop.f32.mrf.mxu0
    %v825 = vadd.f32 %v750, %v824
    %v826 = vpop.f32.mrf.mxu0
    %827 = vdwg.mxu0
    %vm828 = vcmask 25600
    %829 = vst.msk [vmem:[#allocation3] sm:$0x3] %vm828, %v825
    // Predicated region
    $region26: #{textcnn_forward.1} parent=1 // pred_check
      _
    $region27: #{textcnn_forward.1} parent=1 // pred_check_branch
      %831 = sbr.rel (0) target = $region29
    $region28: #{textcnn_forward.1} parent=1 // pred_region
      %s833 = ssub.s32 32, 32
      %834 = vsyncadd [#allocation4], %s833
      %s836 = sshll.u32 [#allocation3], 4
      %s837 = int_to_ptr.vmem [resolvable:$true] %s836
      %839 = dma.vmem_to_hbm [thread:$0]  %s837, 32, %s6, [#allocation4]
    $region29: #{textcnn_forward.1} parent=1 // pred_fallthru
      _
    // Predicated region
    $region30: #{textcnn_forward.1} parent=1 // pred_check
      _
    $region31: #{textcnn_forward.1} parent=1 // pred_check_branch
      %841 = sbr.rel (0) target = $region33
    $region32: #{textcnn_forward.1} parent=1 // pred_region
      %842 = dma.done [#allocation4], 32
    $region33: #{textcnn_forward.1} parent=1 // pred_fallthru
      _
    %843 = vsyncpa [#allocation4], 1

</llo_original>
